<compile_context>
chip_gen: v7x
topology: tpu7x:2x2x1
jax: 0.10.0
libtpu: 0.0.40
codegen_flags: <defaults>
</compile_context>

<pallas_src>
import functools
import math

import jax
import jax.numpy as jnp
from jax import lax
from jax.experimental import pallas as pl
from jax.experimental.pallas import tpu as pltpu

_LANES = 128
# (2048, 128) f32 = 1 MiB per block; comfortably within scoped VMEM on
# v5e/v6e (128 MiB) and v7x (64 MiB) with double buffering of in + out.
_MAX_BLOCK_ROWS = 2048


def _apply_activation(x, kind):
    """Elementwise activation on an f32 tile (VPU/EUP work)."""
    if kind == "gelu":
        # nn.GELU default = exact erf formulation.
        return 0.5 * x * (1.0 + lax.erf(x * (1.0 / math.sqrt(2.0))))
    elif kind == "swish":
        return x * jax.nn.sigmoid(x)
    elif kind == "mish":
        # mish(x) = x * tanh(softplus(x)).  Use the exact identity
        #   tanh(log1p(t)) = ((1+t)^2 - 1)/((1+t)^2 + 1) = t(t+2)/(t(t+2)+2)
        # with t = exp(x): one EUP transcendental instead of three.
        # Clamp the exp argument to avoid overflow; tanh(softplus(x)) == 1
        # to f32 precision for x > 20.
        xc = jnp.minimum(x, 20.0)
        t = jnp.exp(xc)
        g = t * (t + 2.0)
        r = g / (g + 2.0)
        return x * jnp.where(x > 20.0, 1.0, r)
    else:  # default / None -> ReLU
        return jnp.maximum(x, 0.0)


def _activation_kernel(x_ref, o_ref, *, kind):
    x = x_ref[...].astype(jnp.float32)
    o_ref[...] = _apply_activation(x, kind).astype(o_ref.dtype)


def activation_pallas(x, activation=None):
    """Elementwise activation implemented as a Pallas TPU kernel.

    x: any-shaped float array (e.g. NCHW). Returns same shape/dtype.
    """
    kind = activation if activation in ("gelu", "swish", "mish") else "relu"

    orig_shape = x.shape
    orig_dtype = x.dtype
    flat = x.reshape(-1)  # layout-preserving reshape, no HBM copy
    n = flat.shape[0]

    # Pad only to a whole number of 128-lane rows (tiny tail, only if the
    # element count is not already lane-aligned).  Partial *row blocks* are
    # handled by cdiv grid + Pallas write-masking, so no full-block padding
    # (and no extra whole-tensor HBM copies) is needed.
    n_pad = (-n) % _LANES
    if n_pad:
        flat = jnp.concatenate([flat, jnp.zeros((n_pad,), dtype=orig_dtype)])
    slab = flat.reshape(-1, _LANES)  # (rows, 128), lane-dense
    rows = slab.shape[0]

    # block_rows is either a multiple of 8 (2048) or equal to the full row
    # extent, satisfying the (8, 128) block-shape rule.
    block_rows = min(_MAX_BLOCK_ROWS, rows)
    grid = (pl.cdiv(rows, block_rows),)

    out = pl.pallas_call(
        functools.partial(_activation_kernel, kind=kind),
        out_shape=jax.ShapeDtypeStruct(slab.shape, orig_dtype),
        grid=grid,
        in_specs=[pl.BlockSpec((block_rows, _LANES), lambda i: (i, 0))],
        out_specs=pl.BlockSpec((block_rows, _LANES), lambda i: (i, 0)),
        compiler_params=pltpu.CompilerParams(
            # Single parallel axis: no-op on v5e/v6e (1 TC), lets Mosaic shard
            # row blocks across both TensorCores on v7x.
            dimension_semantics=("parallel",),
        ),
    )(slab)

    out = out.reshape(-1)
    if n_pad:
        out = out[:n]
    return out.reshape(orig_shape)


class Activation:
    """JAX/Pallas equivalent of the PyTorch Activation module."""

    def __init__(self, activation=None):
        self.activation = activation

    def __call__(self, x):
        return activation_pallas(x, self.activation)


def _reference(x, activation):
    x32 = x.astype(jnp.float32)
    if activation == "gelu":
        y = 0.5 * x32 * (1.0 + lax.erf(x32 / jnp.sqrt(2.0)))
    elif activation == "swish":
        y = x32 * jax.nn.sigmoid(x32)
    elif activation == "mish":
        y = x32 * jnp.tanh(jax.nn.softplus(x32))
    else:
        y = jnp.maximum(x32, 0.0)
    return y.astype(x.dtype)


if __name__ == "__main__":
    key = jax.random.PRNGKey(0)
    shapes = [
        (2, 4, 16, 16),    # primary NCHW example (exactly 16 lane-rows)
        (3, 5, 7, 11),     # odd element count -> exercises lane-tail padding
        (2, 4, 160, 240),  # 2400 rows -> multi-block grid with partial last block
    ]

    ok = True
    for shape in shapes:
        key, sub = jax.random.split(key)
        x = jax.random.normal(sub, shape, dtype=jnp.float32)
        for act in (None, "gelu", "swish", "mish"):
            mod = Activation(act)
            y = jax.block_until_ready(mod(x))
            y_ref = _reference(x, act)
            if y.shape != x.shape or y.dtype != x.dtype:
                ok = False
            if not jnp.allclose(y, y_ref, atol=1e-5, rtol=1e-5):
                ok = False

    if ok:
        print("KERNEL_OK")
</pallas_src>

<mosaic_0001>
module attributes {stable_mosaic.version = 11 : i64} {
  func.func @_activation_kernel(%arg0: i32, %arg1: memref<16x128xf32, #tpu.memory_space<vmem>>, %arg2: memref<16x128xf32, #tpu.memory_space<vmem>>) attributes {dimension_semantics = [#tpu.dimension_semantics<parallel>], iteration_bounds = array<i64: 1>, scalar_prefetch = 0 : i64, scratch_operands = 0 : i64, tpu.core_type = #tpu.core_type<tc>, window_params = [{transform_indices = @transform_0, window_bounds = array<i64: 16, 128>}, {transform_indices = @transform_1, window_bounds = array<i64: 16, 128>}]} {
    %c0 = arith.constant 0 : index
    %c0_0 = arith.constant 0 : index
    %0 = vector.load %arg1[%c0, %c0_0] : memref<16x128xf32, #tpu.memory_space<vmem>>, vector<16x128xf32>
    %cst = arith.constant 0.000000e+00 : f32
    %1 = vector.broadcast %cst : f32 to vector<16x128xf32>
    %2 = arith.maximumf %0, %1 : vector<16x128xf32>
    %c0_1 = arith.constant 0 : index
    %c0_2 = arith.constant 0 : index
    %3 = vector.load %arg2[%c0_1, %c0_2] : memref<16x128xf32, #tpu.memory_space<vmem>>, vector<16x128xf32>
    tpu.vector_store %arg2[%c0_1, %c0_2], %2 {strides = array<i32>} : memref<16x128xf32, #tpu.memory_space<vmem>>, vector<16x128xf32>,
    return
  }
  func.func @transform_0(%arg0: i32) -> (i32, i32) {
    %c0_i32 = arith.constant 0 : i32
    %c0_i32_0 = arith.constant 0 : i32
    return %arg0, %c0_i32 : i32, i32
  }
  func.func @transform_1(%arg0: i32) -> (i32, i32) {
    %c0_i32 = arith.constant 0 : i32
    %c0_i32_0 = arith.constant 0 : i32
    return %arg0, %c0_i32 : i32, i32
  }
}

</mosaic_0001>

<llo_original>
// kernel: tpu_custom_call.1
$region0: #{tpu_custom_call.1}
  #allocation0 [shape = 'u32[]', space=smem, size = 0x4, offset = 0x4, fixed_abs, tag = 'smem constant byte address 0x4 - core index']
  #allocation1 [shape = 'u32[144,128]{1,0:T(1,128)}', space=vmem, size = 0x12000, scoped, tag = 'internal scratch']
  %s0 = inlined_call_operand.hbm [shape: f32[16,128], index: 0, kind: input, shape index: {}]
  %s1 = inlined_call_operand.hbm [shape: f32[16,128], index: 1, kind: output, shape index: {}]
  %s2 = sld [smem:[#allocation0]]
  $region18: #{tpu_custom_call.1} parent=0
    _
  %s4 = ssub.s32 1, %s2
  %s5 = scalar_select 0, %s4, %s2
  $region1: #{tpu_custom_call.1} parent=0
    #allocation2 [shape = 'u8[8192]{0}', space=vmem, size = 0x2000, scoped, tag = 'input window, operand 0, single buffered']
    #allocation3 [shape = 's32[1]{0}', space=sflag, size = 0x4, scoped, tag = 'scoped memory for tpu_custom_call.1']
    #allocation4 [shape = 's32[1]{0}', space=sflag, size = 0x4, scoped, tag = 'scoped memory for tpu_custom_call.1']
    #allocation5 [shape = 'u8[8192]{0}', space=vmem, size = 0x2000, scoped, tag = 'output window, operand 0, single buffered']
    %6 = vsyncpa [#allocation3], 0
    %7 = vsyncpa [#allocation4], 0
    // Predicated region
    $region2: #{tpu_custom_call.1} parent=1 // pred_check
      _
    $region3: #{tpu_custom_call.1} parent=1 // pred_check_branch
      %9 = sbr.rel (0) target = $region5
    $region4: #{tpu_custom_call.1} parent=1 // pred_region
      %s11 = ssub.s32 256, 256
      %12 = vsyncadd [#allocation3], %s11
      %s13 = sshll.u32 [#allocation2], 4
      %s14 = int_to_ptr.vmem [resolvable:$true] %s13
      %19 = dma.hbm_to_vmem [thread:$0]  %s0, 256, %s14, [#allocation3], 128, 128, 8
    $region5: #{tpu_custom_call.1} parent=1 // pred_fallthru
      _
    // Predicated region
    $region6: #{tpu_custom_call.1} parent=1 // pred_check
      _
    $region7: #{tpu_custom_call.1} parent=1 // pred_check_branch
      %21 = sbr.rel (0) target = $region9
    $region8: #{tpu_custom_call.1} parent=1 // pred_region
      %22 = dma.done [#allocation3], 256
    $region9: #{tpu_custom_call.1} parent=1 // pred_fallthru
      _
    %v23 = vld [vmem:[#allocation2] sm:$0xff]
    %v24 = vld [vmem:[#allocation2 + $0x8] sm:$0xff]
    %v25 = vmax.f32 %v23, 0.0
    %v26 = vmax.f32 %v24, 0.0
    %27 = vst [vmem:[#allocation5] sm:$0xff] %v25
    %28 = vst [vmem:[#allocation5 + $0x8] sm:$0xff] %v26
    // Predicated region
    $region10: #{tpu_custom_call.1} parent=1 // pred_check
      _
    $region11: #{tpu_custom_call.1} parent=1 // pred_check_branch
      %30 = sbr.rel (0) target = $region13
    $region12: #{tpu_custom_call.1} parent=1 // pred_region
      %s32 = ssub.s32 256, 256
      %33 = vsyncadd [#allocation4], %s32
      %s34 = sshll.u32 [#allocation5], 4
      %s35 = int_to_ptr.vmem [resolvable:$true] %s34
      %40 = dma.vmem_to_hbm [thread:$0]  %s35, 256, %s1, [#allocation4], 128, 128, 8
    $region13: #{tpu_custom_call.1} parent=1 // pred_fallthru
      _
    // Predicated region
    $region14: #{tpu_custom_call.1} parent=1 // pred_check
      _
    $region15: #{tpu_custom_call.1} parent=1 // pred_check_branch
      %42 = sbr.rel (0) target = $region17
    $region16: #{tpu_custom_call.1} parent=1 // pred_region
      %43 = dma.done [#allocation4], 256
    $region17: #{tpu_custom_call.1} parent=1 // pred_fallthru
      _
    %44 = vsyncpa [#allocation3], 1
    %45 = vsyncpa [#allocation4], 1

</llo_original>
